<compile_context>
chip_gen: v5e
topology: v5e:2x2
jax: 0.10.0
libtpu: 0.0.40
codegen_flags: <defaults>
</compile_context>

<pallas_src>
import jax
import jax.numpy as jnp
from jax.experimental import pallas as pl
from jax.experimental.pallas import tpu as pltpu

CPAD = 128  # lane-dense output slab width (>= nclass)


def gcn_kernel(x_ref, adj_ref,
               w1_ref, b1_ref,
               wf1_ref, bg1_ref, btc1_ref,
               wf2_ref, bg2_ref, btc2_ref,
               wg3_ref, bg3_ref,
               out_ref):
    x = x_ref[...]        # bf16 [N, nfeat]
    adj = adj_ref[...]    # bf16 [N, N]

    # Hoist bias loads (f32), each read exactly once.
    b1 = b1_ref[...]
    bg1 = bg1_ref[...]
    btc1 = btc1_ref[...]
    bg2 = bg2_ref[...]
    btc2 = btc2_ref[...]
    bg3 = bg3_ref[...]    # [1, 128]; padded lanes pre-filled with -1e30

    # linear1 + ReLU (dropout is identity in eval mode)
    h = jnp.dot(x, w1_ref[...], preferred_element_type=jnp.float32) + b1
    h = jnp.maximum(h, 0.0).astype(jnp.bfloat16)

    def highway(h_in, wf, bg, btc):
        nout = bg.shape[-1]
        # One fused matmul for [Wg | Wt | Wc].
        z = jnp.dot(h_in, wf, preferred_element_type=jnp.float32)
        support = z[:, :nout].astype(jnp.bfloat16)       # graph-conv branch (bias after adj)
        tc = z[:, nout:] + btc                           # gate + carry pre-activations
        t_pre = tc[:, :nout]
        c = tc[:, nout:]
        gc = jnp.dot(adj, support, preferred_element_type=jnp.float32) + bg
        h_gate = jnp.tanh(gc)
        t = jax.nn.sigmoid(t_pre)
        return (c + t * (h_gate - c)).astype(jnp.bfloat16)

    h1 = highway(h, wf1_ref[...], bg1, btc1)
    h2 = highway(h1, wf2_ref[...], bg2, btc2)

    # gc3: GraphConvolution -> logits. Weight is zero beyond nclass and the
    # bias holds -1e30 in the padded lanes, so padded logits ~= -1e30.
    s3 = jnp.dot(h2, wg3_ref[...], preferred_element_type=jnp.float32).astype(jnp.bfloat16)
    logits = jnp.dot(adj, s3, preferred_element_type=jnp.float32) + bg3   # [N, 128]

    # log_softmax along the class axis; padded lanes contribute exp(-huge)=0.
    m = jnp.max(logits, axis=1, keepdims=True)
    s = logits - m
    lse = jnp.log(jnp.sum(jnp.exp(s), axis=1, keepdims=True))
    out_ref[...] = s - lse


def prepare_gcn_params(params):
    """One-time parameter prep: fuse highway weights, pad gc3 to 128 lanes,
    cast matmul operands to bf16. Call once; reuse the result every forward."""
    (w1, b1,
     wg1, bg1, wt1, bt1, wc1, bc1,
     wg2, bg2, wt2, bt2, wc2, bc2,
     wg3, bg3) = params

    bf = jnp.bfloat16
    f32 = jnp.float32
    nhid3, nclass = wg3.shape

    # Fused highway weights [in, 3*out] = [Wg | Wt | Wc]; fused [bt | bc] bias.
    wf1 = jnp.concatenate([wg1, wt1, wc1], axis=1).astype(bf)
    btc1 = jnp.concatenate([bt1, bc1], axis=1).astype(f32)
    wf2 = jnp.concatenate([wg2, wt2, wc2], axis=1).astype(bf)
    btc2 = jnp.concatenate([bt2, bc2], axis=1).astype(f32)

    # gc3 weight padded to 128 output lanes (zeros beyond nclass); bias padded
    # lanes hold -1e30 so the in-kernel log_softmax needs no lane mask.
    wg3p = jnp.zeros((nhid3, CPAD), f32).at[:, :nclass].set(wg3).astype(bf)
    bg3p = jnp.full((1, CPAD), -1e30, f32).at[:, :nclass].set(bg3)

    prepped = (w1.astype(bf), b1.astype(f32),
               wf1, bg1.astype(f32), btc1,
               wf2, bg2.astype(f32), btc2,
               wg3p, bg3p)
    return jax.tree_util.tree_map(jnp.asarray, prepped), nclass


def gcn_forward(x, adj, prepped, nclass):
    """Runs the whole GCN forward as one fused Pallas kernel (all-VMEM).

    `prepped` is the output of prepare_gcn_params (fused/padded bf16 weights)."""
    N = x.shape[0]
    nfeat, nhid1 = prepped[0].shape
    nhid2 = prepped[3].shape[1]
    nhid3 = prepped[6].shape[1]

    inputs = (x.astype(jnp.bfloat16), adj.astype(jnp.bfloat16)) + tuple(prepped)

    flops = (2 * N * nfeat * nhid1
             + 2 * N * nhid1 * 3 * nhid2 + 2 * N * N * nhid2
             + 2 * N * nhid2 * 3 * nhid3 + 2 * N * N * nhid3
             + 2 * N * nhid3 * CPAD + 2 * N * N * CPAD)
    transcendentals = N * (2 * nhid2 + 2 * nhid3 + CPAD)
    bytes_accessed = (sum(int(a.size) * a.dtype.itemsize for a in inputs)
                      + N * CPAD * 4)

    vmem_spec = pl.BlockSpec(memory_space=pltpu.MemorySpace.VMEM)
    out_pad = pl.pallas_call(
        gcn_kernel,
        out_shape=jax.ShapeDtypeStruct((N, CPAD), jnp.float32),
        in_specs=[vmem_spec] * len(inputs),
        out_specs=vmem_spec,
        cost_estimate=pl.CostEstimate(flops=flops,
                                      transcendentals=transcendentals,
                                      bytes_accessed=bytes_accessed),
    )(*inputs)
    # Padded lanes of out_pad contain garbage (~-1e30 - lse); slice them away.
    return out_pad[:, :nclass]


def gcn_reference_bf16(x, adj, params):
    """Pure-JAX reference mirroring the kernel's bf16-operand / f32-accumulate math."""
    bf = jnp.bfloat16
    (w1, b1,
     wg1, bg1, wt1, bt1, wc1, bc1,
     wg2, bg2, wt2, bt2, wc2, bc2,
     wg3, bg3) = params

    xb = x.astype(bf)
    adjb = adj.astype(bf)
    h = jnp.maximum(
        jnp.dot(xb, w1.astype(bf), preferred_element_type=jnp.float32) + b1, 0.0
    ).astype(bf)

    def highway(h_in, wg, bg, wt, bt, wc, bc):
        support = jnp.dot(h_in, wg.astype(bf),
                          preferred_element_type=jnp.float32).astype(bf)
        H = jnp.tanh(jnp.dot(adjb, support, preferred_element_type=jnp.float32) + bg)
        T = jax.nn.sigmoid(
            jnp.dot(h_in, wt.astype(bf), preferred_element_type=jnp.float32) + bt)
        C = jnp.dot(h_in, wc.astype(bf), preferred_element_type=jnp.float32) + bc
        return (C + T * (H - C)).astype(bf)

    h1 = highway(h, wg1, bg1, wt1, bt1, wc1, bc1)
    h2 = highway(h1, wg2, bg2, wt2, bt2, wc2, bc2)
    s3 = jnp.dot(h2, wg3.astype(bf), preferred_element_type=jnp.float32).astype(bf)
    logits = jnp.dot(adjb, s3, preferred_element_type=jnp.float32) + bg3
    return jax.nn.log_softmax(logits, axis=1)


def gcn_reference_f32(x, adj, params):
    """Full-precision semantic reference (loose-tolerance sanity check)."""
    (w1, b1,
     wg1, bg1, wt1, bt1, wc1, bc1,
     wg2, bg2, wt2, bt2, wc2, bc2,
     wg3, bg3) = params

    h = jax.nn.relu(x @ w1 + b1)

    def highway(h_in, wg, bg, wt, bt, wc, bc):
        H = jnp.tanh(adj @ (h_in @ wg) + bg)
        T = jax.nn.sigmoid(h_in @ wt + bt)
        C = h_in @ wc + bc
        return T * H + (1.0 - T) * C

    h1 = highway(h, wg1, bg1, wt1, bt1, wc1, bc1)
    h2 = highway(h1, wg2, bg2, wt2, bt2, wc2, bc2)
    logits = adj @ (h2 @ wg3) + bg3
    return jax.nn.log_softmax(logits, axis=1)


def make_params(key, nfeat, nhid1, nhid2, nhid3, nclass):
    def dense(key, fan_in, fan_out):
        kw, kb = jax.random.split(key)
        scale = 1.0 / jnp.sqrt(jnp.float32(fan_in))
        w = jax.random.uniform(kw, (fan_in, fan_out), jnp.float32, -scale, scale)
        b = jax.random.uniform(kb, (1, fan_out), jnp.float32, -scale, scale)
        return w, b

    keys = jax.random.split(key, 8)
    w1, b1 = dense(keys[0], nfeat, nhid1)                 # linear1
    wg1, bg1 = dense(keys[1], nhid1, nhid2)               # hw1 graph-conv
    wt1, bt1 = dense(keys[2], nhid1, nhid2)               # hw1 gate
    wc1, bc1 = dense(keys[3], nhid1, nhid2)               # hw1 carry proj
    wg2, bg2 = dense(keys[4], nhid2, nhid3)               # hw2 graph-conv
    wt2, bt2 = dense(keys[5], nhid2, nhid3)               # hw2 gate
    wc2, bc2 = dense(keys[6], nhid2, nhid3)               # hw2 carry proj
    wg3, bg3 = dense(keys[7], nhid3, nclass)              # gc3
    return (w1, b1,
            wg1, bg1, wt1, bt1, wc1, bc1,
            wg2, bg2, wt2, bt2, wc2, bc2,
            wg3, bg3)


if __name__ == "__main__":
    N, nfeat, nhid1, nhid2, nhid3, nclass = 64, 32, 32, 32, 32, 16

    root = jax.random.PRNGKey(0)
    kx, kadj, kparams = jax.random.split(root, 3)

    x = jax.random.normal(kx, (N, nfeat), jnp.float32)

    # Deterministic symmetric row-normalized adjacency (with self-loops), f32.
    a = (jax.random.uniform(kadj, (N, N)) < 0.1).astype(jnp.float32)
    a = jnp.maximum(a, a.T) + jnp.eye(N, dtype=jnp.float32)
    deg = jnp.sum(a, axis=1, keepdims=True)
    adj = a / deg

    params = make_params(kparams, nfeat, nhid1, nhid2, nhid3, nclass)

    # One-time weight prep (fuse/pad/cast); reused for every forward call.
    prepped, nclass_out = prepare_gcn_params(params)
    prepped = jax.block_until_ready(prepped)

    out = gcn_forward(x, adj, prepped, nclass_out)
    out = jax.block_until_ready(out)
    assert out.shape == (N, nclass)
    assert bool(jnp.all(jnp.isfinite(out)))

    # Exact-pipeline check (same bf16 operand rounding as the kernel).
    ref_bf16 = gcn_reference_bf16(x, adj, params)
    assert jnp.allclose(out, ref_bf16, atol=1e-3, rtol=1e-3), \
        "mismatch vs bf16-mirrored JAX reference"

    # Loose semantic sanity check against a full-f32 reference.
    ref_f32 = gcn_reference_f32(x, adj, params)
    assert jnp.allclose(out, ref_f32, atol=1e-1, rtol=1e-1), \
        "mismatch vs f32 JAX reference (semantics)"

    print("KERNEL_OK")
</pallas_src>

<mosaic_0001>
module attributes {stable_mosaic.version = 11 : i64} {
  func.func @gcn_kernel(%arg0: memref<64x32xbf16, #tpu.memory_space<vmem>>, %arg1: memref<64x64xbf16, #tpu.memory_space<vmem>>, %arg2: memref<32x32xbf16, #tpu.memory_space<vmem>>, %arg3: memref<1x32xf32, #tpu.memory_space<vmem>>, %arg4: memref<32x96xbf16, #tpu.memory_space<vmem>>, %arg5: memref<1x32xf32, #tpu.memory_space<vmem>>, %arg6: memref<1x64xf32, #tpu.memory_space<vmem>>, %arg7: memref<32x96xbf16, #tpu.memory_space<vmem>>, %arg8: memref<1x32xf32, #tpu.memory_space<vmem>>, %arg9: memref<1x64xf32, #tpu.memory_space<vmem>>, %arg10: memref<32x128xbf16, #tpu.memory_space<vmem>>, %arg11: memref<1x128xf32, #tpu.memory_space<vmem>>, %arg12: memref<64x128xf32, #tpu.memory_space<vmem>>) attributes {dimension_semantics = [], scalar_prefetch = 0 : i64, scratch_operands = 0 : i64, tpu.core_type = #tpu.core_type<tc>} {
    %c0 = arith.constant 0 : index
    %c0_0 = arith.constant 0 : index
    %0 = vector.load %arg0[%c0, %c0_0] : memref<64x32xbf16, #tpu.memory_space<vmem>>, vector<64x32xbf16>
    %c0_1 = arith.constant 0 : index
    %c0_2 = arith.constant 0 : index
    %1 = vector.load %arg1[%c0_1, %c0_2] : memref<64x64xbf16, #tpu.memory_space<vmem>>, vector<64x64xbf16>
    %c0_3 = arith.constant 0 : index
    %c0_4 = arith.constant 0 : index
    %2 = vector.load %arg3[%c0_3, %c0_4] : memref<1x32xf32, #tpu.memory_space<vmem>>, vector<1x32xf32>
    %c0_5 = arith.constant 0 : index
    %c0_6 = arith.constant 0 : index
    %3 = vector.load %arg5[%c0_5, %c0_6] : memref<1x32xf32, #tpu.memory_space<vmem>>, vector<1x32xf32>
    %c0_7 = arith.constant 0 : index
    %c0_8 = arith.constant 0 : index
    %4 = vector.load %arg6[%c0_7, %c0_8] : memref<1x64xf32, #tpu.memory_space<vmem>>, vector<1x64xf32>
    %c0_9 = arith.constant 0 : index
    %c0_10 = arith.constant 0 : index
    %5 = vector.load %arg8[%c0_9, %c0_10] : memref<1x32xf32, #tpu.memory_space<vmem>>, vector<1x32xf32>
    %c0_11 = arith.constant 0 : index
    %c0_12 = arith.constant 0 : index
    %6 = vector.load %arg9[%c0_11, %c0_12] : memref<1x64xf32, #tpu.memory_space<vmem>>, vector<1x64xf32>
    %c0_13 = arith.constant 0 : index
    %c0_14 = arith.constant 0 : index
    %7 = vector.load %arg11[%c0_13, %c0_14] : memref<1x128xf32, #tpu.memory_space<vmem>>, vector<1x128xf32>
    %c0_15 = arith.constant 0 : index
    %c0_16 = arith.constant 0 : index
    %8 = vector.load %arg2[%c0_15, %c0_16] : memref<32x32xbf16, #tpu.memory_space<vmem>>, vector<32x32xbf16>
    %cst = arith.constant dense<0.000000e+00> : vector<64x32xf32>
    %9 = tpu.matmul %0, %8, %cst {dimension_numbers = #tpu.dot_dimension_numbers<[1], [0], [0], [1], [0, 0, 1, 1], [], []>} : vector<64x32xbf16>, vector<32x32xbf16>, vector<64x32xf32> -> vector<64x32xf32>
    %10 = vector.broadcast %2 : vector<1x32xf32> to vector<64x32xf32>
    %11 = arith.addf %9, %10 : vector<64x32xf32>
    %cst_17 = arith.constant 0.000000e+00 : f32
    %12 = vector.broadcast %cst_17 : f32 to vector<64x32xf32>
    %13 = arith.maximumf %11, %12 : vector<64x32xf32>
    %14 = arith.truncf %13 : vector<64x32xf32> to vector<64x32xbf16>
    %c0_18 = arith.constant 0 : index
    %c0_19 = arith.constant 0 : index
    %15 = vector.load %arg4[%c0_18, %c0_19] : memref<32x96xbf16, #tpu.memory_space<vmem>>, vector<32x96xbf16>
    %cst_20 = arith.constant dense<0.000000e+00> : vector<64x96xf32>
    %16 = tpu.matmul %14, %15, %cst_20 {dimension_numbers = #tpu.dot_dimension_numbers<[1], [0], [0], [1], [0, 0, 1, 1], [], []>} : vector<64x32xbf16>, vector<32x96xbf16>, vector<64x96xf32> -> vector<64x96xf32>
    %17 = vector.extract_strided_slice %16 {offsets = [0, 0], sizes = [64, 32], strides = [1, 1]} : vector<64x96xf32> to vector<64x32xf32>
    %18 = arith.truncf %17 : vector<64x32xf32> to vector<64x32xbf16>
    %19 = vector.extract_strided_slice %16 {offsets = [0, 32], sizes = [64, 64], strides = [1, 1]} : vector<64x96xf32> to vector<64x64xf32>
    %20 = vector.broadcast %4 : vector<1x64xf32> to vector<64x64xf32>
    %21 = arith.addf %19, %20 : vector<64x64xf32>
    %22 = vector.extract_strided_slice %21 {offsets = [0, 0], sizes = [64, 32], strides = [1, 1]} : vector<64x64xf32> to vector<64x32xf32>
    %23 = vector.extract_strided_slice %21 {offsets = [0, 32], sizes = [64, 32], strides = [1, 1]} : vector<64x64xf32> to vector<64x32xf32>
    %cst_21 = arith.constant dense<0.000000e+00> : vector<64x32xf32>
    %24 = tpu.matmul %1, %18, %cst_21 {dimension_numbers = #tpu.dot_dimension_numbers<[1], [0], [0], [1], [0, 0, 1, 1], [], []>} : vector<64x64xbf16>, vector<64x32xbf16>, vector<64x32xf32> -> vector<64x32xf32>
    %25 = vector.broadcast %3 : vector<1x32xf32> to vector<64x32xf32>
    %26 = arith.addf %24, %25 : vector<64x32xf32>
    %27 = math.tanh %26 : vector<64x32xf32>
    %28 = arith.negf %22 : vector<64x32xf32>
    %29 = math.exp %28 : vector<64x32xf32>
    %cst_22 = arith.constant 1.000000e+00 : f32
    %30 = vector.broadcast %cst_22 : f32 to vector<64x32xf32>
    %31 = arith.addf %30, %29 : vector<64x32xf32>
    %32 = arith.divf %30, %31 : vector<64x32xf32>
    %33 = arith.subf %27, %23 : vector<64x32xf32>
    %34 = arith.mulf %32, %33 : vector<64x32xf32>
    %35 = arith.addf %23, %34 : vector<64x32xf32>
    %36 = arith.truncf %35 : vector<64x32xf32> to vector<64x32xbf16>
    %c0_23 = arith.constant 0 : index
    %c0_24 = arith.constant 0 : index
    %37 = vector.load %arg7[%c0_23, %c0_24] : memref<32x96xbf16, #tpu.memory_space<vmem>>, vector<32x96xbf16>
    %cst_25 = arith.constant dense<0.000000e+00> : vector<64x96xf32>
    %38 = tpu.matmul %36, %37, %cst_25 {dimension_numbers = #tpu.dot_dimension_numbers<[1], [0], [0], [1], [0, 0, 1, 1], [], []>} : vector<64x32xbf16>, vector<32x96xbf16>, vector<64x96xf32> -> vector<64x96xf32>
    %39 = vector.extract_strided_slice %38 {offsets = [0, 0], sizes = [64, 32], strides = [1, 1]} : vector<64x96xf32> to vector<64x32xf32>
    %40 = arith.truncf %39 : vector<64x32xf32> to vector<64x32xbf16>
    %41 = vector.extract_strided_slice %38 {offsets = [0, 32], sizes = [64, 64], strides = [1, 1]} : vector<64x96xf32> to vector<64x64xf32>
    %42 = vector.broadcast %6 : vector<1x64xf32> to vector<64x64xf32>
    %43 = arith.addf %41, %42 : vector<64x64xf32>
    %44 = vector.extract_strided_slice %43 {offsets = [0, 0], sizes = [64, 32], strides = [1, 1]} : vector<64x64xf32> to vector<64x32xf32>
    %45 = vector.extract_strided_slice %43 {offsets = [0, 32], sizes = [64, 32], strides = [1, 1]} : vector<64x64xf32> to vector<64x32xf32>
    %cst_26 = arith.constant dense<0.000000e+00> : vector<64x32xf32>
    %46 = tpu.matmul %1, %40, %cst_26 {dimension_numbers = #tpu.dot_dimension_numbers<[1], [0], [0], [1], [0, 0, 1, 1], [], []>} : vector<64x64xbf16>, vector<64x32xbf16>, vector<64x32xf32> -> vector<64x32xf32>
    %47 = vector.broadcast %5 : vector<1x32xf32> to vector<64x32xf32>
    %48 = arith.addf %46, %47 : vector<64x32xf32>
    %49 = math.tanh %48 : vector<64x32xf32>
    %50 = arith.negf %44 : vector<64x32xf32>
    %51 = math.exp %50 : vector<64x32xf32>
    %cst_27 = arith.constant 1.000000e+00 : f32
    %52 = vector.broadcast %cst_27 : f32 to vector<64x32xf32>
    %53 = arith.addf %52, %51 : vector<64x32xf32>
    %54 = arith.divf %52, %53 : vector<64x32xf32>
    %55 = arith.subf %49, %45 : vector<64x32xf32>
    %56 = arith.mulf %54, %55 : vector<64x32xf32>
    %57 = arith.addf %45, %56 : vector<64x32xf32>
    %58 = arith.truncf %57 : vector<64x32xf32> to vector<64x32xbf16>
    %c0_28 = arith.constant 0 : index
    %c0_29 = arith.constant 0 : index
    %59 = vector.load %arg10[%c0_28, %c0_29] : memref<32x128xbf16, #tpu.memory_space<vmem>>, vector<32x128xbf16>
    %cst_30 = arith.constant dense<0.000000e+00> : vector<64x128xf32>
    %60 = tpu.matmul %58, %59, %cst_30 {dimension_numbers = #tpu.dot_dimension_numbers<[1], [0], [0], [1], [0, 0, 1, 1], [], []>} : vector<64x32xbf16>, vector<32x128xbf16>, vector<64x128xf32> -> vector<64x128xf32>
    %61 = arith.truncf %60 : vector<64x128xf32> to vector<64x128xbf16>
    %cst_31 = arith.constant dense<0.000000e+00> : vector<64x128xf32>
    %62 = tpu.matmul %1, %61, %cst_31 {dimension_numbers = #tpu.dot_dimension_numbers<[1], [0], [0], [1], [0, 0, 1, 1], [], []>} : vector<64x64xbf16>, vector<64x128xbf16>, vector<64x128xf32> -> vector<64x128xf32>
    %63 = vector.broadcast %7 : vector<1x128xf32> to vector<64x128xf32>
    %64 = arith.addf %62, %63 : vector<64x128xf32>
    %cst_32 = arith.constant dense<0xFF800000> : vector<64xf32>
    %65 = vector.multi_reduction <maximumf>, %64, %cst_32 [1] : vector<64x128xf32> to vector<64xf32>
    %66 = vector.shape_cast %65 : vector<64xf32> to vector<64x1xf32>
    %67 = vector.broadcast %66 : vector<64x1xf32> to vector<64x128xf32>
    %68 = arith.subf %64, %67 : vector<64x128xf32>
    %69 = math.exp %68 : vector<64x128xf32>
    %cst_33 = arith.constant dense<0.000000e+00> : vector<64xf32>
    %70 = vector.multi_reduction <add>, %69, %cst_33 [1] : vector<64x128xf32> to vector<64xf32>
    %71 = vector.shape_cast %70 : vector<64xf32> to vector<64x1xf32>
    %72 = math.log %71 : vector<64x1xf32>
    %73 = vector.broadcast %72 : vector<64x1xf32> to vector<64x128xf32>
    %74 = arith.subf %68, %73 : vector<64x128xf32>
    %c0_34 = arith.constant 0 : index
    %c0_35 = arith.constant 0 : index
    %75 = vector.load %arg12[%c0_34, %c0_35] : memref<64x128xf32, #tpu.memory_space<vmem>>, vector<64x128xf32>
    tpu.vector_store %arg12[%c0_34, %c0_35], %74 {strides = array<i32>} : memref<64x128xf32, #tpu.memory_space<vmem>>, vector<64x128xf32>,
    return
  }
}

</mosaic_0001>

<llo_original>
// kernel: tpu_custom_call.1
$region0: #{tpu_custom_call.1}
  #allocation0 [shape = 'u32[]', space=smem, size = 0x4, offset = 0x4, fixed_abs, tag = 'smem constant byte address 0x4 - core index']
  #allocation1 [shape = 'u32[72,128]{1,0:T(1,128)}', space=vmem, size = 0x9000, scoped, tag = 'internal scratch']
  %s0 = inlined_call_operand.vmem [shape: bf16[64,32], index: 0, kind: input, shape index: {}]
  %s1 = inlined_call_operand.vmem [shape: bf16[64,64], index: 1, kind: input, shape index: {}]
  %s2 = inlined_call_operand.vmem [shape: bf16[32,32], index: 2, kind: input, shape index: {}]
  %s3 = inlined_call_operand.vmem [shape: f32[1,32], index: 3, kind: input, shape index: {}]
  %s4 = inlined_call_operand.hbm [shape: bf16[32,96], index: 4, kind: input, shape index: {}]
  %s5 = inlined_call_operand.vmem [shape: f32[1,32], index: 5, kind: input, shape index: {}]
  %s6 = inlined_call_operand.vmem [shape: f32[1,64], index: 6, kind: input, shape index: {}]
  %s7 = inlined_call_operand.hbm [shape: bf16[32,96], index: 7, kind: input, shape index: {}]
  %s8 = inlined_call_operand.vmem [shape: f32[1,32], index: 8, kind: input, shape index: {}]
  %s9 = inlined_call_operand.vmem [shape: f32[1,64], index: 9, kind: input, shape index: {}]
  %s10 = inlined_call_operand.hbm [shape: bf16[32,128], index: 10, kind: input, shape index: {}]
  %s11 = inlined_call_operand.vmem [shape: f32[1,128], index: 11, kind: input, shape index: {}]
  %s12 = inlined_call_operand.hbm [shape: f32[64,128], index: 12, kind: output, shape index: {}]
  %s13 = sld [smem:[#allocation0]]
  $region70: #{tpu_custom_call.1} parent=0
    _
  %s15 = ssub.s32 1, %s13
  %s16 = scalar_select 0, %s15, %s13
  $region1: #{tpu_custom_call.1} parent=0
    #allocation2 [shape = 'u8[8192]{0}', space=vmem, size = 0x2000, scoped, tag = 'input window, operand 4, single buffered']
    #allocation3 [shape = 's32[1]{0}', space=sflag, size = 0x4, scoped, tag = 'scoped memory for tpu_custom_call.1']
    #allocation4 [shape = 's32[1]{0}', space=sflag, size = 0x4, scoped, tag = 'scoped memory for tpu_custom_call.1']
    #allocation5 [shape = 'u8[8192]{0}', space=vmem, size = 0x2000, scoped, tag = 'input window, operand 7, single buffered']
    #allocation6 [shape = 's32[1]{0}', space=sflag, size = 0x4, scoped, tag = 'scoped memory for tpu_custom_call.1']
    #allocation7 [shape = 'u8[8192]{0}', space=vmem, size = 0x2000, scoped, tag = 'input window, operand 10, single buffered']
    #allocation8 [shape = 'u8[32768]{0}', space=vmem, size = 0x8000, scoped, tag = 'output window, operand 0, single buffered']
    %17 = vsyncpa [#allocation3], 0
    %18 = vsyncpa [#allocation6], 0
    %19 = vsyncpa [#allocation4], 0
    // Predicated region
    $region2: #{tpu_custom_call.1} parent=1 // pred_check
      _
    $region3: #{tpu_custom_call.1} parent=1 // pred_check_branch
      %21 = sbr.rel (0) target = $region5
    $region4: #{tpu_custom_call.1} parent=1 // pred_region
      _
    $region5: #{tpu_custom_call.1} parent=1 // pred_fallthru
      _
    // Predicated region
    $region6: #{tpu_custom_call.1} parent=1 // pred_check
      _
    $region7: #{tpu_custom_call.1} parent=1 // pred_check_branch
      %23 = sbr.rel (0) target = $region9
    $region8: #{tpu_custom_call.1} parent=1 // pred_region
      _
    $region9: #{tpu_custom_call.1} parent=1 // pred_fallthru
      _
    // Predicated region
    $region10: #{tpu_custom_call.1} parent=1 // pred_check
      _
    $region11: #{tpu_custom_call.1} parent=1 // pred_check_branch
      %25 = sbr.rel (0) target = $region13
    $region12: #{tpu_custom_call.1} parent=1 // pred_region
      _
    $region13: #{tpu_custom_call.1} parent=1 // pred_fallthru
      _
    // Predicated region
    $region14: #{tpu_custom_call.1} parent=1 // pred_check
      _
    $region15: #{tpu_custom_call.1} parent=1 // pred_check_branch
      %27 = sbr.rel (0) target = $region17
    $region16: #{tpu_custom_call.1} parent=1 // pred_region
      _
    $region17: #{tpu_custom_call.1} parent=1 // pred_fallthru
      _
    // Predicated region
    $region18: #{tpu_custom_call.1} parent=1 // pred_check
      _
    $region19: #{tpu_custom_call.1} parent=1 // pred_check_branch
      %29 = sbr.rel (0) target = $region21
    $region20: #{tpu_custom_call.1} parent=1 // pred_region
      %31 = vsyncadd [#allocation3], 0
      %s32 = sshll.u32 %s4, 4
      %s33 = int_to_ptr.hbm [resolvable:$true] %s32
      %s34 = sshll.u32 [#allocation2], 4
      %s35 = int_to_ptr.vmem [resolvable:$true] %s34
      %40 = dma.hbm_to_vmem [thread:$0]  %s33, 256, %s35, [#allocation3], 64, 64, 4
    $region21: #{tpu_custom_call.1} parent=1 // pred_fallthru
      _
    // Predicated region
    $region22: #{tpu_custom_call.1} parent=1 // pred_check
      _
    $region23: #{tpu_custom_call.1} parent=1 // pred_check_branch
      %42 = sbr.rel (0) target = $region25
    $region24: #{tpu_custom_call.1} parent=1 // pred_region
      _
    $region25: #{tpu_custom_call.1} parent=1 // pred_fallthru
      _
    // Predicated region
    $region26: #{tpu_custom_call.1} parent=1 // pred_check
      _
    $region27: #{tpu_custom_call.1} parent=1 // pred_check_branch
      %44 = sbr.rel (0) target = $region29
    $region28: #{tpu_custom_call.1} parent=1 // pred_region
      _
    $region29: #{tpu_custom_call.1} parent=1 // pred_fallthru
      _
    // Predicated region
    $region30: #{tpu_custom_call.1} parent=1 // pred_check
      _
    $region31: #{tpu_custom_call.1} parent=1 // pred_check_branch
      %46 = sbr.rel (0) target = $region33
    $region32: #{tpu_custom_call.1} parent=1 // pred_region
      %48 = vsyncadd [#allocation6], 0
      %s49 = sshll.u32 %s7, 4
      %s50 = int_to_ptr.hbm [resolvable:$true] %s49
      %s51 = sshll.u32 [#allocation5], 4
      %s52 = int_to_ptr.vmem [resolvable:$true] %s51
      %57 = dma.hbm_to_vmem [thread:$0]  %s50, 256, %s52, [#allocation6], 64, 64, 4
    $region33: #{tpu_custom_call.1} parent=1 // pred_fallthru
      _
    // Predicated region
    $region34: #{tpu_custom_call.1} parent=1 // pred_check
      _
    $region35: #{tpu_custom_call.1} parent=1 // pred_check_branch
      %59 = sbr.rel (0) target = $region37
    $region36: #{tpu_custom_call.1} parent=1 // pred_region
      _
    $region37: #{tpu_custom_call.1} parent=1 // pred_fallthru
      _
    // Predicated region
    $region38: #{tpu_custom_call.1} parent=1 // pred_check
      _
    $region39: #{tpu_custom_call.1} parent=1 // pred_check_branch
      %61 = sbr.rel (0) target = $region41
    $region40: #{tpu_custom_call.1} parent=1 // pred_region
      _
    $region41: #{tpu_custom_call.1} parent=1 // pred_fallthru
      _
    // Predicated region
    $region42: #{tpu_custom_call.1} parent=1 // pred_check
      _
    $region43: #{tpu_custom_call.1} parent=1 // pred_check_branch
      %63 = sbr.rel (0) target = $region45
    $region44: #{tpu_custom_call.1} parent=1 // pred_region
      %65 = vsyncadd [#allocation6], 0
      %s66 = sshll.u32 %s10, 4
      %s67 = int_to_ptr.hbm [resolvable:$true] %s66
      %s68 = sshll.u32 [#allocation7], 4
      %s69 = int_to_ptr.vmem [resolvable:$true] %s68
      %74 = dma.hbm_to_vmem [thread:$0]  %s67, 256, %s69, [#allocation6], 64, 64, 4
    $region45: #{tpu_custom_call.1} parent=1 // pred_fallthru
      _
    // Predicated region
    $region46: #{tpu_custom_call.1} parent=1 // pred_check
      _
    $region47: #{tpu_custom_call.1} parent=1 // pred_check_branch
      %76 = sbr.rel (0) target = $region49
    $region48: #{tpu_custom_call.1} parent=1 // pred_region
      _
    $region49: #{tpu_custom_call.1} parent=1 // pred_fallthru
      _
    // Predicated region
    $region50: #{tpu_custom_call.1} parent=1 // pred_check
      _
    $region51: #{tpu_custom_call.1} parent=1 // pred_check_branch
      %78 = sbr.rel (0) target = $region53
    $region52: #{tpu_custom_call.1} parent=1 // pred_region
      %80 = dma.done [#allocation3], 256
    $region53: #{tpu_custom_call.1} parent=1 // pred_fallthru
      _
    // Predicated region
    $region54: #{tpu_custom_call.1} parent=1 // pred_check
      _
    $region55: #{tpu_custom_call.1} parent=1 // pred_check_branch
      %82 = sbr.rel (0) target = $region57
    $region56: #{tpu_custom_call.1} parent=1 // pred_region
      %84 = dma.done [#allocation6], 256
    $region57: #{tpu_custom_call.1} parent=1 // pred_fallthru
      _
    // Predicated region
    $region58: #{tpu_custom_call.1} parent=1 // pred_check
      _
    $region59: #{tpu_custom_call.1} parent=1 // pred_check_branch
      %86 = sbr.rel (0) target = $region61
    $region60: #{tpu_custom_call.1} parent=1 // pred_region
      %88 = dma.done [#allocation6], 256
    $region61: #{tpu_custom_call.1} parent=1 // pred_fallthru
      _
    %v90 = vld [vmem:[%s0] sm:$0xf]
    %v91 = vld [vmem:[%s0 + $0x4] sm:$0xf]
    %v92 = vld [vmem:[%s0 + $0x8] sm:$0xf]
    %v93 = vld [vmem:[%s0 + $0xc] sm:$0xf]
    %v94 = vld [vmem:[%s0 + $0x10] sm:$0xf]
    %v95 = vld [vmem:[%s0 + $0x14] sm:$0xf]
    %v96 = vld [vmem:[%s0 + $0x18] sm:$0xf]
    %v97 = vld [vmem:[%s0 + $0x1c] sm:$0xf]
    %v98 = vld [vmem:[%s1] sm:$0xf]
    %v99 = vld [vmem:[%s1 + $0x4] sm:$0xf]
    %v100 = vld [vmem:[%s1 + $0x8] sm:$0xf]
    %v101 = vld [vmem:[%s1 + $0xc] sm:$0xf]
    %v102 = vld [vmem:[%s1 + $0x10] sm:$0xf]
    %v103 = vld [vmem:[%s1 + $0x14] sm:$0xf]
    %v104 = vld [vmem:[%s1 + $0x18] sm:$0xf]
    %v105 = vld [vmem:[%s1 + $0x1c] sm:$0xf]
    %v106 = vld [vmem:[%s3] sm:$0x1]
    %v107 = vld [vmem:[%s5] sm:$0x1]
    %v108 = vld [vmem:[%s6] sm:$0x1]
    %v109 = vld [vmem:[%s8] sm:$0x1]
    %v110 = vld [vmem:[%s9] sm:$0x1]
    %v111 = vld [vmem:[%s11] sm:$0x1]
    %v112 = vld [vmem:[%s2] sm:$0xf]
    %v113 = vld [vmem:[%s2 + $0x4] sm:$0xf]
    %v114 = vld [vmem:[%s2 + $0x8] sm:$0xf]
    %v115 = vld [vmem:[%s2 + $0xc] sm:$0xf]
    %v117 = vperm.slane %v106, 0
    %v127 = vunpack.c.l.b16 %v90
    %v128 = vunpack.c.l.b16 %v91
    %v129 = vunpack.c.l.b16 %v92
    %v130 = vunpack.c.l.b16 %v93
    %v131 = vunpack.c.l.b16 %v94
    %v132 = vunpack.c.l.b16 %v95
    %v133 = vunpack.c.l.b16 %v96
    %v134 = vunpack.c.l.b16 %v97
    %v135 = vpack.c.b16 %v128, %v127
    %v136 = vpack.c.b16 %v130, %v129
    %v137 = vpack.c.b16 %v132, %v131
    %v138 = vpack.c.b16 %v134, %v133
    %v143 = vunpack.c.l.b16 %v112
    %v144 = vunpack.c.l.b16 %v113
    %v145 = vunpack.c.l.b16 %v114
    %v146 = vunpack.c.l.b16 %v115
    %v147 = vpack.c.b16 %v144, %v143
    %v148 = vpack.c.b16 %v146, %v145
    %vm151 = vcmask 261120
    %v153 = vsel %vm151, %v135, 0
    %v156 = vsel %vm151, %v136, 0
    %v159 = vsel %vm151, %v137, 0
    %v162 = vsel %vm151, %v138, 0
    %164 = vmatpush.bf16.msra.mxu0 0
    %165 = vmatpush.bf16.msra.mxu0 0
    %166 = vmatpush.bf16.msra.mxu0 0
    %167 = vmatpush.bf16.msra.mxu0 0
    %168 = vmatpush.bf16.msra.mxu0 0
    %169 = vmatpush.bf16.msra.mxu0 0
    %170 = vmatpush.bf16.msra.mxu0 %v148
    %171 = vmatpush.bf16.msra.mxu0 %v147
    %172 = vmatmul.bf16.gmra.mxu0 %v153
    %v173 = vpop.f32.mrf.mxu0
    %v174 = vadd.f32 %v117, %v173
    %v175 = vpop.f32.mrf.mxu0
    %v176 = vadd.f32 %v117, %v175
    %177 = vmatmul.bf16.gmra.mxu0 %v156
    %v178 = vpop.f32.mrf.mxu0
    %v179 = vadd.f32 %v117, %v178
    %v180 = vpop.f32.mrf.mxu0
    %v181 = vadd.f32 %v117, %v180
    %182 = vmatmul.bf16.gmra.mxu0 %v159
    %v183 = vpop.f32.mrf.mxu0
    %v184 = vadd.f32 %v117, %v183
    %v185 = vpop.f32.mrf.mxu0
    %v186 = vadd.f32 %v117, %v185
    %187 = vmatmul.bf16.gmra.mxu0 %v162
    %v188 = vpop.f32.mrf.mxu0
    %v189 = vadd.f32 %v117, %v188
    %v190 = vpop.f32.mrf.mxu0
    %v191 = vadd.f32 %v117, %v190
    %192 = vdwg.mxu0
    %v193 = vmax.f32 %v174, 0.0
    %v194 = vmax.f32 %v176, 0.0
    %v195 = vmax.f32 %v179, 0.0
    %v196 = vmax.f32 %v181, 0.0
    %v197 = vmax.f32 %v184, 0.0
    %v198 = vmax.f32 %v186, 0.0
    %v199 = vmax.f32 %v189, 0.0
    %v200 = vmax.f32 %v191, 0.0
    %v201 = vpack.c.bf16 %v194, %v193
    %v202 = vpack.c.bf16 %v196, %v195
    %v203 = vpack.c.bf16 %v198, %v197
    %v204 = vpack.c.bf16 %v200, %v199
    %v205 = vld [vmem:[#allocation2] sm:$0xf]
    %v206 = vld [vmem:[#allocation2 + $0x4] sm:$0xf]
    %v207 = vld [vmem:[#allocation2 + $0x8] sm:$0xf]
    %v208 = vld [vmem:[#allocation2 + $0xc] sm:$0xf]
    %v213 = vunpack.c.l.b16 %v205
    %v214 = vunpack.c.l.b16 %v206
    %v215 = vunpack.c.l.b16 %v207
    %v216 = vunpack.c.l.b16 %v208
    %v217 = vpack.c.b16 %v214, %v213
    %v218 = vpack.c.b16 %v216, %v215
    %v222 = vsel %vm151, %v201, 0
    %v225 = vsel %vm151, %v202, 0
    %v228 = vsel %vm151, %v203, 0
    %v231 = vsel %vm151, %v204, 0
    %233 = vmatpush.bf16.msra.mxu0 0
    %234 = vmatpush.bf16.msra.mxu0 0
    %235 = vmatpush.bf16.msra.mxu0 0
    %236 = vmatpush.bf16.msra.mxu0 0
    %237 = vmatpush.bf16.msra.mxu0 0
    %238 = vmatpush.bf16.msra.mxu0 0
    %239 = vmatpush.bf16.msra.mxu0 %v218
    %240 = vmatpush.bf16.msra.mxu0 %v217
    %241 = vmatmul.bf16.gmra.mxu0 %v222
    %v242 = vpop.f32.mrf.mxu0
    %v243 = vadd.f32 0.0, %v242
    %v244 = vpop.f32.mrf.mxu0
    %v245 = vadd.f32 0.0, %v244
    %246 = vmatmul.bf16.gmra.mxu0 %v225
    %v247 = vpop.f32.mrf.mxu0
    %v248 = vadd.f32 0.0, %v247
    %v249 = vpop.f32.mrf.mxu0
    %v250 = vadd.f32 0.0, %v249
    %251 = vmatmul.bf16.gmra.mxu0 %v228
    %v252 = vpop.f32.mrf.mxu0
    %v253 = vadd.f32 0.0, %v252
    %v254 = vpop.f32.mrf.mxu0
    %v255 = vadd.f32 0.0, %v254
    %256 = vmatmul.bf16.gmra.mxu0 %v231
    %v257 = vpop.f32.mrf.mxu0
    %v258 = vadd.f32 0.0, %v257
    %v259 = vpop.f32.mrf.mxu0
    %v260 = vadd.f32 0.0, %v259
    %261 = vdwg.mxu0
    %v262 = vpack.c.bf16 %v245, %v243
    %v263 = vpack.c.bf16 %v250, %v248
    %v264 = vpack.c.bf16 %v255, %v253
    %v265 = vpack.c.bf16 %v260, %v258
    %v267 = vperm.slane %v108, 0
    %268 = vrot.lane.b32.xlu0 %v267, 32
    %v269 = vpop.permute.xlu0 %268
    %v271 = vadd.f32 %v243, %v269
    %v272 = vadd.f32 %v245, %v269
    %v273 = vadd.f32 %v248, %v269
    %v274 = vadd.f32 %v250, %v269
    %v275 = vadd.f32 %v253, %v269
    %v276 = vadd.f32 %v255, %v269
    %v277 = vadd.f32 %v258, %v269
    %v278 = vadd.f32 %v260, %v269
    %v280 = vperm.slane %v107, 0
    %v290 = vunpack.c.l.b16 %v98
    %v291 = vunpack.c.l.b16 %v99
    %v292 = vunpack.c.l.b16 %v100
    %v293 = vunpack.c.l.b16 %v101
    %v294 = vunpack.c.l.b16 %v102
    %v295 = vunpack.c.l.b16 %v103
    %v296 = vunpack.c.l.b16 %v104
    %v297 = vunpack.c.l.b16 %v105
    %v298 = vpack.c.b16 %v291, %v290
    %v299 = vpack.c.b16 %v293, %v292
    %v300 = vpack.c.b16 %v295, %v294
    %v301 = vpack.c.b16 %v297, %v296
    %vm302 = vcmask 523264
    %v304 = vsel %vm302, %v298, 0
    %v307 = vsel %vm302, %v299, 0
    %v310 = vsel %vm302, %v300, 0
    %v313 = vsel %vm302, %v301, 0
    %315 = vmatpush.bf16.msra.mxu0 0
    %316 = vmatpush.bf16.msra.mxu0 0
    %317 = vmatpush.bf16.msra.mxu0 0
    %318 = vmatpush.bf16.msra.mxu0 0
    %319 = vmatpush.bf16.msra.mxu0 %v265
    %320 = vmatpush.bf16.msra.mxu0 %v264
    %321 = vmatpush.bf16.msra.mxu0 %v263
    %322 = vmatpush.bf16.msra.mxu0 %v262
    %323 = vmatmul.bf16.gmra.mxu0 %v304
    %v324 = vpop.f32.mrf.mxu0
    %v325 = vadd.f32 %v280, %v324
    %v326 = vpop.f32.mrf.mxu0
    %v327 = vadd.f32 %v280, %v326
    %328 = vmatmul.bf16.gmra.mxu0 %v307
    %v329 = vpop.f32.mrf.mxu0
    %v330 = vadd.f32 %v280, %v329
    %v331 = vpop.f32.mrf.mxu0
    %v332 = vadd.f32 %v280, %v331
    %333 = vmatmul.bf16.gmra.mxu0 %v310
    %v334 = vpop.f32.mrf.mxu0
    %v335 = vadd.f32 %v280, %v334
    %v336 = vpop.f32.mrf.mxu0
    %v337 = vadd.f32 %v280, %v336
    %338 = vmatmul.bf16.gmra.mxu0 %v313
    %v339 = vpop.f32.mrf.mxu0
    %v340 = vadd.f32 %v280, %v339
    %v341 = vpop.f32.mrf.mxu0
    %v342 = vadd.f32 %v280, %v341
    %343 = vdwg.mxu0
    %v344 = vtanh.pop %v325
    %v345 = vtanh.pop %v327
    %v346 = vtanh.pop %v330
    %v347 = vtanh.pop %v332
    %v348 = vtanh.pop %v335
    %v349 = vtanh.pop %v337
    %v350 = vtanh.pop %v340
    %v351 = vtanh.pop %v342
    %v352 = vxor.u32 %v271, 2147483648
    %v353 = vxor.u32 %v272, 2147483648
    %v354 = vxor.u32 %v273, 2147483648
    %v355 = vxor.u32 %v274, 2147483648
    %v356 = vxor.u32 %v275, 2147483648
    %v357 = vxor.u32 %v276, 2147483648
    %v358 = vxor.u32 %v277, 2147483648
    %v359 = vxor.u32 %v278, 2147483648
    %v360 = vmul.f32 %v352, 1.442695
    %v361 = vpow.pop %v360
    %v362 = vmul.f32 %v353, 1.442695
    %v363 = vpow.pop %v362
    %v364 = vmul.f32 %v354, 1.442695
    %v365 = vpow.pop %v364
    %v366 = vmul.f32 %v355, 1.442695
    %v367 = vpow.pop %v366
    %v368 = vmul.f32 %v356, 1.442695
    %v369 = vpow.pop %v368
    %v370 = vmul.f32 %v357, 1.442695
    %v371 = vpow.pop %v370
    %v372 = vmul.f32 %v358, 1.442695
    %v373 = vpow.pop %v372
    %v374 = vmul.f32 %v359, 1.442695
    %v375 = vpow.pop %v374
    %v376 = vadd.f32 %v361, 1.0
    %v377 = vadd.f32 %v363, 1.0
    %v378 = vadd.f32 %v365, 1.0
    %v379 = vadd.f32 %v367, 1.0
    %v380 = vadd.f32 %v369, 1.0
    %v381 = vadd.f32 %v371, 1.0
    %v382 = vadd.f32 %v373, 1.0
    %v383 = vadd.f32 %v375, 1.0
    %v384 = vrcp.pop %v376
    %v385 = vmul.f32 %v376, %v384
    %v386 = vsub.f32 1.0, %v385
    %v387 = vmul.f32 %v384, %v386
    %v388 = vadd.f32 %v384, %v387
    %vm389 = vweird.f32 %v376
    %vm390 = vweird.f32 %v384
    %vm391 = vmor %vm389, %vm390
    %v392 = vsel %vm391, %v384, %v388
    %v393 = vand.u32 2147483647, %v376
    %vm394 = vcmp.eq.f32.partialorder %v393, 8.507059e+37
    %v395 = vand.u32 %v376, 2147483648
    %v396 = vor.u32 1.1754944e-38, %v395
    %v397 = vsel %vm394, %v396, %v392
    %v398 = vmul.f32 1.0, %v397
    %v399 = vrcp.pop %v377
    %v400 = vmul.f32 %v377, %v399
    %v401 = vsub.f32 1.0, %v400
    %v402 = vmul.f32 %v399, %v401
    %v403 = vadd.f32 %v399, %v402
    %vm404 = vweird.f32 %v377
    %vm405 = vweird.f32 %v399
    %vm406 = vmor %vm404, %vm405
    %v407 = vsel %vm406, %v399, %v403
    %v408 = vand.u32 2147483647, %v377
    %vm409 = vcmp.eq.f32.partialorder %v408, 8.507059e+37
    %v410 = vand.u32 %v377, 2147483648
    %v411 = vor.u32 1.1754944e-38, %v410
    %v412 = vsel %vm409, %v411, %v407
    %v413 = vmul.f32 1.0, %v412
    %v414 = vrcp.pop %v378
    %v415 = vmul.f32 %v378, %v414
    %v416 = vsub.f32 1.0, %v415
    %v417 = vmul.f32 %v414, %v416
    %v418 = vadd.f32 %v414, %v417
    %vm419 = vweird.f32 %v378
    %vm420 = vweird.f32 %v414
    %vm421 = vmor %vm419, %vm420
    %v422 = vsel %vm421, %v414, %v418
    %v423 = vand.u32 2147483647, %v378
    %vm424 = vcmp.eq.f32.partialorder %v423, 8.507059e+37
    %v425 = vand.u32 %v378, 2147483648
    %v426 = vor.u32 1.1754944e-38, %v425
    %v427 = vsel %vm424, %v426, %v422
    %v428 = vmul.f32 1.0, %v427
    %v429 = vrcp.pop %v379
    %v430 = vmul.f32 %v379, %v429
    %v431 = vsub.f32 1.0, %v430
    %v432 = vmul.f32 %v429, %v431
    %v433 = vadd.f32 %v429, %v432
    %vm434 = vweird.f32 %v379
    %vm435 = vweird.f32 %v429
    %vm436 = vmor %vm434, %vm435
    %v437 = vsel %vm436, %v429, %v433
    %v438 = vand.u32 2147483647, %v379
    %vm439 = vcmp.eq.f32.partialorder %v438, 8.507059e+37
    %v440 = vand.u32 %v379, 2147483648
    %v441 = vor.u32 1.1754944e-38, %v440
    %v442 = vsel %vm439, %v441, %v437
    %v443 = vmul.f32 1.0, %v442
    %v444 = vrcp.pop %v380
    %v445 = vmul.f32 %v380, %v444
    %v446 = vsub.f32 1.0, %v445
    %v447 = vmul.f32 %v444, %v446
    %v448 = vadd.f32 %v444, %v447
    %vm449 = vweird.f32 %v380
    %vm450 = vweird.f32 %v444
    %vm451 = vmor %vm449, %vm450
    %v452 = vsel %vm451, %v444, %v448
    %v453 = vand.u32 2147483647, %v380
    %vm454 = vcmp.eq.f32.partialorder %v453, 8.507059e+37
    %v455 = vand.u32 %v380, 2147483648
    %v456 = vor.u32 1.1754944e-38, %v455
    %v457 = vsel %vm454, %v456, %v452
    %v458 = vmul.f32 1.0, %v457
    %v459 = vrcp.pop %v381
    %v460 = vmul.f32 %v381, %v459
    %v461 = vsub.f32 1.0, %v460
    %v462 = vmul.f32 %v459, %v461
    %v463 = vadd.f32 %v459, %v462
    %vm464 = vweird.f32 %v381
    %vm465 = vweird.f32 %v459
    %vm466 = vmor %vm464, %vm465
    %v467 = vsel %vm466, %v459, %v463
    %v468 = vand.u32 2147483647, %v381
    %vm469 = vcmp.eq.f32.partialorder %v468, 8.507059e+37
    %v470 = vand.u32 %v381, 2147483648
    %v471 = vor.u32 1.1754944e-38, %v470
    %v472 = vsel %vm469, %v471, %v467
    %v473 = vmul.f32 1.0, %v472
    %v474 = vrcp.pop %v382
    %v475 = vmul.f32 %v382, %v474
    %v476 = vsub.f32 1.0, %v475
    %v477 = vmul.f32 %v474, %v476
    %v478 = vadd.f32 %v474, %v477
    %vm479 = vweird.f32 %v382
    %vm480 = vweird.f32 %v474
    %vm481 = vmor %vm479, %vm480
    %v482 = vsel %vm481, %v474, %v478
    %v483 = vand.u32 2147483647, %v382
    %vm484 = vcmp.eq.f32.partialorder %v483, 8.507059e+37
    %v485 = vand.u32 %v382, 2147483648
    %v486 = vor.u32 1.1754944e-38, %v485
    %v487 = vsel %vm484, %v486, %v482
    %v488 = vmul.f32 1.0, %v487
    %v489 = vrcp.pop %v383
    %v490 = vmul.f32 %v383, %v489
    %v491 = vsub.f32 1.0, %v490
    %v492 = vmul.f32 %v489, %v491
    %v493 = vadd.f32 %v489, %v492
    %vm494 = vweird.f32 %v383
    %vm495 = vweird.f32 %v489
    %vm496 = vmor %vm494, %vm495
    %v497 = vsel %vm496, %v489, %v493
    %v498 = vand.u32 2147483647, %v383
    %vm499 = vcmp.eq.f32.partialorder %v498, 8.507059e+37
    %v500 = vand.u32 %v383, 2147483648
    %v501 = vor.u32 1.1754944e-38, %v500
    %v502 = vsel %vm499, %v501, %v497
    %v503 = vmul.f32 1.0, %v502
    %512 = vrot.lane.b32.xlu0 %v271, 64
    %v513 = vpop.permute.xlu0 %512
    %514 = vrot.lane.b32.xlu0 %v272, 64
    %v515 = vpop.permute.xlu0 %514
    %516 = vrot.lane.b32.xlu0 %v273, 64
    %v517 = vpop.permute.xlu0 %516
    %518 = vrot.lane.b32.xlu0 %v274, 64
    %v519 = vpop.permute.xlu0 %518
    %520 = vrot.lane.b32.xlu0 %v275, 64
    %v521 = vpop.permute.xlu0 %520
    %522 = vrot.lane.b32.xlu0 %v276, 64
    %v523 = vpop.permute.xlu0 %522
    %524 = vrot.lane.b32.xlu0 %v277, 64
    %v525 = vpop.permute.xlu0 %524
    %526 = vrot.lane.b32.xlu0 %v278, 64
    %v527 = vpop.permute.xlu0 %526
    %v536 = vsub.f32 %v344, %v513
    %v537 = vsub.f32 %v345, %v515
    %v538 = vsub.f32 %v346, %v517
    %v539 = vsub.f32 %v347, %v519
    %v540 = vsub.f32 %v348, %v521
    %v541 = vsub.f32 %v349, %v523
    %v542 = vsub.f32 %v350, %v525
    %v543 = vsub.f32 %v351, %v527
    %552 = vrot.lane.b32.xlu0 %v536, 32
    %v553 = vpop.permute.xlu0 %552
    %554 = vrot.lane.b32.xlu0 %v537, 32
    %v555 = vpop.permute.xlu0 %554
    %556 = vrot.lane.b32.xlu0 %v538, 32
    %v557 = vpop.permute.xlu0 %556
    %558 = vrot.lane.b32.xlu0 %v539, 32
    %v559 = vpop.permute.xlu0 %558
    %560 = vrot.lane.b32.xlu0 %v540, 32
    %v561 = vpop.permute.xlu0 %560
    %562 = vrot.lane.b32.xlu0 %v541, 32
    %v563 = vpop.permute.xlu0 %562
    %564 = vrot.lane.b32.xlu0 %v542, 32
    %v565 = vpop.permute.xlu0 %564
    %566 = vrot.lane.b32.xlu0 %v543, 32
    %v567 = vpop.permute.xlu0 %566
    %v576 = vmul.f32 %v398, %v553
    %v577 = vmul.f32 %v413, %v555
    %v578 = vmul.f32 %v428, %v557
    %v579 = vmul.f32 %v443, %v559
    %v580 = vmul.f32 %v458, %v561
    %v581 = vmul.f32 %v473, %v563
    %v582 = vmul.f32 %v488, %v565
    %v583 = vmul.f32 %v503, %v567
    %592 = vrot.lane.b32.xlu0 %v576, 32
    %v593 = vpop.permute.xlu0 %592
    %594 = vrot.lane.b32.xlu0 %v577, 32
    %v595 = vpop.permute.xlu0 %594
    %596 = vrot.lane.b32.xlu0 %v578, 32
    %v597 = vpop.permute.xlu0 %596
    %598 = vrot.lane.b32.xlu0 %v579, 32
    %v599 = vpop.permute.xlu0 %598
    %600 = vrot.lane.b32.xlu0 %v580, 32
    %v601 = vpop.permute.xlu0 %600
    %602 = vrot.lane.b32.xlu0 %v581, 32
    %v603 = vpop.permute.xlu0 %602
    %604 = vrot.lane.b32.xlu0 %v582, 32
    %v605 = vpop.permute.xlu0 %604
    %606 = vrot.lane.b32.xlu0 %v583, 32
    %v607 = vpop.permute.xlu0 %606
    %v616 = vadd.f32 %v271, %v593
    %v617 = vadd.f32 %v272, %v595
    %v618 = vadd.f32 %v273, %v597
    %v619 = vadd.f32 %v274, %v599
    %v620 = vadd.f32 %v275, %v601
    %v621 = vadd.f32 %v276, %v603
    %v622 = vadd.f32 %v277, %v605
    %v623 = vadd.f32 %v278, %v607
    %v624 = vpack.c.bf16 %v617, %v616
    %v625 = vpack.c.bf16 %v619, %v618
    %v626 = vpack.c.bf16 %v621, %v620
    %v627 = vpack.c.bf16 %v623, %v622
    %v628 = vld [vmem:[#allocation5] sm:$0xf]
    %v629 = vld [vmem:[#allocation5 + $0x4] sm:$0xf]
    %v630 = vld [vmem:[#allocation5 + $0x8] sm:$0xf]
    %v631 = vld [vmem:[#allocation5 + $0xc] sm:$0xf]
    %636 = vrot.lane.b32.xlu0 %v624, 64
    %v637 = vpop.permute.xlu0 %636
    %638 = vrot.lane.b32.xlu0 %v625, 64
    %v639 = vpop.permute.xlu0 %638
    %640 = vrot.lane.b32.xlu0 %v626, 64
    %v641 = vpop.permute.xlu0 %640
    %642 = vrot.lane.b32.xlu0 %v627, 64
    %v643 = vpop.permute.xlu0 %642
    %v648 = vunpack.c.l.b16 %v628
    %v649 = vunpack.c.l.b16 %v629
    %v650 = vunpack.c.l.b16 %v630
    %v651 = vunpack.c.l.b16 %v631
    %v652 = vpack.c.b16 %v649, %v648
    %v653 = vpack.c.b16 %v651, %v650
    %v657 = vsel %vm151, %v637, 0
    %v660 = vsel %vm151, %v639, 0
    %v663 = vsel %vm151, %v641, 0
    %v666 = vsel %vm151, %v643, 0
    %668 = vmatpush.bf16.msra.mxu0 0
    %669 = vmatpush.bf16.msra.mxu0 0
    %670 = vmatpush.bf16.msra.mxu0 0
    %671 = vmatpush.bf16.msra.mxu0 0
    %672 = vmatpush.bf16.msra.mxu0 0
    %673 = vmatpush.bf16.msra.mxu0 0
    %674 = vmatpush.bf16.msra.mxu0 %v653
    %675 = vmatpush.bf16.msra.mxu0 %v652
    %676 = vmatmul.bf16.gmra.mxu0 %v657
    %v677 = vpop.f32.mrf.mxu0
    %v678 = vadd.f32 0.0, %v677
    %v679 = vpop.f32.mrf.mxu0
    %v680 = vadd.f32 0.0, %v679
    %681 = vmatmul.bf16.gmra.mxu0 %v660
    %v682 = vpop.f32.mrf.mxu0
    %v683 = vadd.f32 0.0, %v682
    %v684 = vpop.f32.mrf.mxu0
    %v685 = vadd.f32 0.0, %v684
    %686 = vmatmul.bf16.gmra.mxu0 %v663
    %v687 = vpop.f32.mrf.mxu0
    %v688 = vadd.f32 0.0, %v687
    %v689 = vpop.f32.mrf.mxu0
    %v690 = vadd.f32 0.0, %v689
    %691 = vmatmul.bf16.gmra.mxu0 %v666
    %v692 = vpop.f32.mrf.mxu0
    %v693 = vadd.f32 0.0, %v692
    %v694 = vpop.f32.mrf.mxu0
    %v695 = vadd.f32 0.0, %v694
    %696 = vdwg.mxu0
    %v697 = vpack.c.bf16 %v680, %v678
    %v698 = vpack.c.bf16 %v685, %v683
    %v699 = vpack.c.bf16 %v690, %v688
    %v700 = vpack.c.bf16 %v695, %v693
    %v702 = vperm.slane %v110, 0
    %703 = vrot.lane.b32.xlu0 %v702, 32
    %v704 = vpop.permute.xlu0 %703
    %v706 = vadd.f32 %v678, %v704
    %v707 = vadd.f32 %v680, %v704
    %v708 = vadd.f32 %v683, %v704
    %v709 = vadd.f32 %v685, %v704
    %v710 = vadd.f32 %v688, %v704
    %v711 = vadd.f32 %v690, %v704
    %v712 = vadd.f32 %v693, %v704
    %v713 = vadd.f32 %v695, %v704
    %v715 = vperm.slane %v109, 0
    %717 = vmatpush.bf16.msra.mxu0 0
    %718 = vmatpush.bf16.msra.mxu0 0
    %719 = vmatpush.bf16.msra.mxu0 0
    %720 = vmatpush.bf16.msra.mxu0 0
    %721 = vmatpush.bf16.msra.mxu0 %v700
    %722 = vmatpush.bf16.msra.mxu0 %v699
    %723 = vmatpush.bf16.msra.mxu0 %v698
    %724 = vmatpush.bf16.msra.mxu0 %v697
    %725 = vmatmul.bf16.gmra.mxu0 %v304
    %v726 = vpop.f32.mrf.mxu0
    %v727 = vadd.f32 %v715, %v726
    %v728 = vpop.f32.mrf.mxu0
    %v729 = vadd.f32 %v715, %v728
    %730 = vmatmul.bf16.gmra.mxu0 %v307
    %v731 = vpop.f32.mrf.mxu0
    %v732 = vadd.f32 %v715, %v731
    %v733 = vpop.f32.mrf.mxu0
    %v734 = vadd.f32 %v715, %v733
    %735 = vmatmul.bf16.gmra.mxu0 %v310
    %v736 = vpop.f32.mrf.mxu0
    %v737 = vadd.f32 %v715, %v736
    %v738 = vpop.f32.mrf.mxu0
    %v739 = vadd.f32 %v715, %v738
    %740 = vmatmul.bf16.gmra.mxu0 %v313
    %v741 = vpop.f32.mrf.mxu0
    %v742 = vadd.f32 %v715, %v741
    %v743 = vpop.f32.mrf.mxu0
    %v744 = vadd.f32 %v715, %v743
    %745 = vdwg.mxu0
    %v746 = vtanh.pop %v727
    %v747 = vtanh.pop %v729
    %v748 = vtanh.pop %v732
    %v749 = vtanh.pop %v734
    %v750 = vtanh.pop %v737
    %v751 = vtanh.pop %v739
    %v752 = vtanh.pop %v742
    %v753 = vtanh.pop %v744
    %v754 = vxor.u32 %v706, 2147483648
    %v755 = vxor.u32 %v707, 2147483648
    %v756 = vxor.u32 %v708, 2147483648
    %v757 = vxor.u32 %v709, 2147483648
    %v758 = vxor.u32 %v710, 2147483648
    %v759 = vxor.u32 %v711, 2147483648
    %v760 = vxor.u32 %v712, 2147483648
    %v761 = vxor.u32 %v713, 2147483648
    %v762 = vmul.f32 %v754, 1.442695
    %v763 = vpow.pop %v762
    %v764 = vmul.f32 %v755, 1.442695
    %v765 = vpow.pop %v764
    %v766 = vmul.f32 %v756, 1.442695
    %v767 = vpow.pop %v766
    %v768 = vmul.f32 %v757, 1.442695
    %v769 = vpow.pop %v768
    %v770 = vmul.f32 %v758, 1.442695
    %v771 = vpow.pop %v770
    %v772 = vmul.f32 %v759, 1.442695
    %v773 = vpow.pop %v772
    %v774 = vmul.f32 %v760, 1.442695
    %v775 = vpow.pop %v774
    %v776 = vmul.f32 %v761, 1.442695
    %v777 = vpow.pop %v776
    %v778 = vadd.f32 %v763, 1.0
    %v779 = vadd.f32 %v765, 1.0
    %v780 = vadd.f32 %v767, 1.0
    %v781 = vadd.f32 %v769, 1.0
    %v782 = vadd.f32 %v771, 1.0
    %v783 = vadd.f32 %v773, 1.0
    %v784 = vadd.f32 %v775, 1.0
    %v785 = vadd.f32 %v777, 1.0
    %v786 = vrcp.pop %v778
    %v787 = vmul.f32 %v778, %v786
    %v788 = vsub.f32 1.0, %v787
    %v789 = vmul.f32 %v786, %v788
    %v790 = vadd.f32 %v786, %v789
    %vm791 = vweird.f32 %v778
    %vm792 = vweird.f32 %v786
    %vm793 = vmor %vm791, %vm792
    %v794 = vsel %vm793, %v786, %v790
    %v795 = vand.u32 2147483647, %v778
    %vm796 = vcmp.eq.f32.partialorder %v795, 8.507059e+37
    %v797 = vand.u32 %v778, 2147483648
    %v798 = vor.u32 1.1754944e-38, %v797
    %v799 = vsel %vm796, %v798, %v794
    %v800 = vmul.f32 1.0, %v799
    %v801 = vrcp.pop %v779
    %v802 = vmul.f32 %v779, %v801
    %v803 = vsub.f32 1.0, %v802
    %v804 = vmul.f32 %v801, %v803
    %v805 = vadd.f32 %v801, %v804
    %vm806 = vweird.f32 %v779
    %vm807 = vweird.f32 %v801
    %vm808 = vmor %vm806, %vm807
    %v809 = vsel %vm808, %v801, %v805
    %v810 = vand.u32 2147483647, %v779
    %vm811 = vcmp.eq.f32.partialorder %v810, 8.507059e+37
    %v812 = vand.u32 %v779, 2147483648
    %v813 = vor.u32 1.1754944e-38, %v812
    %v814 = vsel %vm811, %v813, %v809
    %v815 = vmul.f32 1.0, %v814
    %v816 = vrcp.pop %v780
    %v817 = vmul.f32 %v780, %v816
    %v818 = vsub.f32 1.0, %v817
    %v819 = vmul.f32 %v816, %v818
    %v820 = vadd.f32 %v816, %v819
    %vm821 = vweird.f32 %v780
    %vm822 = vweird.f32 %v816
    %vm823 = vmor %vm821, %vm822
    %v824 = vsel %vm823, %v816, %v820
    %v825 = vand.u32 2147483647, %v780
    %vm826 = vcmp.eq.f32.partialorder %v825, 8.507059e+37
    %v827 = vand.u32 %v780, 2147483648
    %v828 = vor.u32 1.1754944e-38, %v827
    %v829 = vsel %vm826, %v828, %v824
    %v830 = vmul.f32 1.0, %v829
    %v831 = vrcp.pop %v781
    %v832 = vmul.f32 %v781, %v831
    %v833 = vsub.f32 1.0, %v832
    %v834 = vmul.f32 %v831, %v833
    %v835 = vadd.f32 %v831, %v834
    %vm836 = vweird.f32 %v781
    %vm837 = vweird.f32 %v831
    %vm838 = vmor %vm836, %vm837
    %v839 = vsel %vm838, %v831, %v835
    %v840 = vand.u32 2147483647, %v781
    %vm841 = vcmp.eq.f32.partialorder %v840, 8.507059e+37
    %v842 = vand.u32 %v781, 2147483648
    %v843 = vor.u32 1.1754944e-38, %v842
    %v844 = vsel %vm841, %v843, %v839
    %v845 = vmul.f32 1.0, %v844
    %v846 = vrcp.pop %v782
    %v847 = vmul.f32 %v782, %v846
    %v848 = vsub.f32 1.0, %v847
    %v849 = vmul.f32 %v846, %v848
    %v850 = vadd.f32 %v846, %v849
    %vm851 = vweird.f32 %v782
    %vm852 = vweird.f32 %v846
    %vm853 = vmor %vm851, %vm852
    %v854 = vsel %vm853, %v846, %v850
    %v855 = vand.u32 2147483647, %v782
    %vm856 = vcmp.eq.f32.partialorder %v855, 8.507059e+37
    %v857 = vand.u32 %v782, 2147483648
    %v858 = vor.u32 1.1754944e-38, %v857
    %v859 = vsel %vm856, %v858, %v854
    %v860 = vmul.f32 1.0, %v859
    %v861 = vrcp.pop %v783
    %v862 = vmul.f32 %v783, %v861
    %v863 = vsub.f32 1.0, %v862
    %v864 = vmul.f32 %v861, %v863
    %v865 = vadd.f32 %v861, %v864
    %vm866 = vweird.f32 %v783
    %vm867 = vweird.f32 %v861
    %vm868 = vmor %vm866, %vm867
    %v869 = vsel %vm868, %v861, %v865
    %v870 = vand.u32 2147483647, %v783
    %vm871 = vcmp.eq.f32.partialorder %v870, 8.507059e+37
    %v872 = vand.u32 %v783, 2147483648
    %v873 = vor.u32 1.1754944e-38, %v872
    %v874 = vsel %vm871, %v873, %v869
    %v875 = vmul.f32 1.0, %v874
    %v876 = vrcp.pop %v784
    %v877 = vmul.f32 %v784, %v876
    %v878 = vsub.f32 1.0, %v877
    %v879 = vmul.f32 %v876, %v878
    %v880 = vadd.f32 %v876, %v879
    %vm881 = vweird.f32 %v784
    %vm882 = vweird.f32 %v876
    %vm883 = vmor %vm881, %vm882
    %v884 = vsel %vm883, %v876, %v880
    %v885 = vand.u32 2147483647, %v784
    %vm886 = vcmp.eq.f32.partialorder %v885, 8.507059e+37
    %v887 = vand.u32 %v784, 2147483648
    %v888 = vor.u32 1.1754944e-38, %v887
    %v889 = vsel %vm886, %v888, %v884
    %v890 = vmul.f32 1.0, %v889
    %v891 = vrcp.pop %v785
    %v892 = vmul.f32 %v785, %v891
    %v893 = vsub.f32 1.0, %v892
    %v894 = vmul.f32 %v891, %v893
    %v895 = vadd.f32 %v891, %v894
    %vm896 = vweird.f32 %v785
    %vm897 = vweird.f32 %v891
    %vm898 = vmor %vm896, %vm897
    %v899 = vsel %vm898, %v891, %v895
    %v900 = vand.u32 2147483647, %v785
    %vm901 = vcmp.eq.f32.partialorder %v900, 8.507059e+37
    %v902 = vand.u32 %v785, 2147483648
    %v903 = vor.u32 1.1754944e-38, %v902
    %v904 = vsel %vm901, %v903, %v899
    %v905 = vmul.f32 1.0, %v904
    %914 = vrot.lane.b32.xlu0 %v706, 64
    %v915 = vpop.permute.xlu0 %914
    %916 = vrot.lane.b32.xlu0 %v707, 64
    %v917 = vpop.permute.xlu0 %916
    %918 = vrot.lane.b32.xlu0 %v708, 64
    %v919 = vpop.permute.xlu0 %918
    %920 = vrot.lane.b32.xlu0 %v709, 64
    %v921 = vpop.permute.xlu0 %920
    %922 = vrot.lane.b32.xlu0 %v710, 64
    %v923 = vpop.permute.xlu0 %922
    %924 = vrot.lane.b32.xlu0 %v711, 64
    %v925 = vpop.permute.xlu0 %924
    %926 = vrot.lane.b32.xlu0 %v712, 64
    %v927 = vpop.permute.xlu0 %926
    %928 = vrot.lane.b32.xlu0 %v713, 64
    %v929 = vpop.permute.xlu0 %928
    %v938 = vsub.f32 %v746, %v915
    %v939 = vsub.f32 %v747, %v917
    %v940 = vsub.f32 %v748, %v919
    %v941 = vsub.f32 %v749, %v921
    %v942 = vsub.f32 %v750, %v923
    %v943 = vsub.f32 %v751, %v925
    %v944 = vsub.f32 %v752, %v927
    %v945 = vsub.f32 %v753, %v929
    %954 = vrot.lane.b32.xlu0 %v938, 32
    %v955 = vpop.permute.xlu0 %954
    %956 = vrot.lane.b32.xlu0 %v939, 32
    %v957 = vpop.permute.xlu0 %956
    %958 = vrot.lane.b32.xlu0 %v940, 32
    %v959 = vpop.permute.xlu0 %958
    %960 = vrot.lane.b32.xlu0 %v941, 32
    %v961 = vpop.permute.xlu0 %960
    %962 = vrot.lane.b32.xlu0 %v942, 32
    %v963 = vpop.permute.xlu0 %962
    %964 = vrot.lane.b32.xlu0 %v943, 32
    %v965 = vpop.permute.xlu0 %964
    %966 = vrot.lane.b32.xlu0 %v944, 32
    %v967 = vpop.permute.xlu0 %966
    %968 = vrot.lane.b32.xlu0 %v945, 32
    %v969 = vpop.permute.xlu0 %968
    %v978 = vmul.f32 %v800, %v955
    %v979 = vmul.f32 %v815, %v957
    %v980 = vmul.f32 %v830, %v959
    %v981 = vmul.f32 %v845, %v961
    %v982 = vmul.f32 %v860, %v963
    %v983 = vmul.f32 %v875, %v965
    %v984 = vmul.f32 %v890, %v967
    %v985 = vmul.f32 %v905, %v969
    %994 = vrot.lane.b32.xlu0 %v978, 32
    %v995 = vpop.permute.xlu0 %994
    %996 = vrot.lane.b32.xlu0 %v979, 32
    %v997 = vpop.permute.xlu0 %996
    %998 = vrot.lane.b32.xlu0 %v980, 32
    %v999 = vpop.permute.xlu0 %998
    %1000 = vrot.lane.b32.xlu0 %v981, 32
    %v1001 = vpop.permute.xlu0 %1000
    %1002 = vrot.lane.b32.xlu0 %v982, 32
    %v1003 = vpop.permute.xlu0 %1002
    %1004 = vrot.lane.b32.xlu0 %v983, 32
    %v1005 = vpop.permute.xlu0 %1004
    %1006 = vrot.lane.b32.xlu0 %v984, 32
    %v1007 = vpop.permute.xlu0 %1006
    %1008 = vrot.lane.b32.xlu0 %v985, 32
    %v1009 = vpop.permute.xlu0 %1008
    %v1018 = vadd.f32 %v706, %v995
    %v1019 = vadd.f32 %v707, %v997
    %v1020 = vadd.f32 %v708, %v999
    %v1021 = vadd.f32 %v709, %v1001
    %v1022 = vadd.f32 %v710, %v1003
    %v1023 = vadd.f32 %v711, %v1005
    %v1024 = vadd.f32 %v712, %v1007
    %v1025 = vadd.f32 %v713, %v1009
    %v1026 = vpack.c.bf16 %v1019, %v1018
    %v1027 = vpack.c.bf16 %v1021, %v1020
    %v1028 = vpack.c.bf16 %v1023, %v1022
    %v1029 = vpack.c.bf16 %v1025, %v1024
    %v1030 = vld [vmem:[#allocation7] sm:$0xf]
    %v1031 = vld [vmem:[#allocation7 + $0x4] sm:$0xf]
    %v1032 = vld [vmem:[#allocation7 + $0x8] sm:$0xf]
    %v1033 = vld [vmem:[#allocation7 + $0xc] sm:$0xf]
    %1038 = vrot.lane.b32.xlu0 %v1026, 64
    %v1039 = vpop.permute.xlu0 %1038
    %1040 = vrot.lane.b32.xlu0 %v1027, 64
    %v1041 = vpop.permute.xlu0 %1040
    %1042 = vrot.lane.b32.xlu0 %v1028, 64
    %v1043 = vpop.permute.xlu0 %1042
    %1044 = vrot.lane.b32.xlu0 %v1029, 64
    %v1045 = vpop.permute.xlu0 %1044
    %v1050 = vunpack.c.l.b16 %v1030
    %v1051 = vunpack.c.l.b16 %v1031
    %v1052 = vunpack.c.l.b16 %v1032
    %v1053 = vunpack.c.l.b16 %v1033
    %v1054 = vpack.c.b16 %v1051, %v1050
    %v1055 = vpack.c.b16 %v1053, %v1052
    %v1059 = vsel %vm151, %v1039, 0
    %v1062 = vsel %vm151, %v1041, 0
    %v1065 = vsel %vm151, %v1043, 0
    %v1068 = vsel %vm151, %v1045, 0
    %1070 = vmatpush.bf16.msra.mxu0 0
    %1071 = vmatpush.bf16.msra.mxu0 0
    %1072 = vmatpush.bf16.msra.mxu0 0
    %1073 = vmatpush.bf16.msra.mxu0 0
    %1074 = vmatpush.bf16.msra.mxu0 0
    %1075 = vmatpush.bf16.msra.mxu0 0
    %1076 = vmatpush.bf16.msra.mxu0 %v1055
    %1077 = vmatpush.bf16.msra.mxu0 %v1054
    %1078 = vmatmul.bf16.gmra.mxu0 %v1059
    %v1079 = vpop.f32.mrf.mxu0
    %v1080 = vadd.f32 0.0, %v1079
    %v1081 = vpop.f32.mrf.mxu0
    %v1082 = vadd.f32 0.0, %v1081
    %1083 = vmatmul.bf16.gmra.mxu0 %v1062
    %v1084 = vpop.f32.mrf.mxu0
    %v1085 = vadd.f32 0.0, %v1084
    %v1086 = vpop.f32.mrf.mxu0
    %v1087 = vadd.f32 0.0, %v1086
    %1088 = vmatmul.bf16.gmra.mxu0 %v1065
    %v1089 = vpop.f32.mrf.mxu0
    %v1090 = vadd.f32 0.0, %v1089
    %v1091 = vpop.f32.mrf.mxu0
    %v1092 = vadd.f32 0.0, %v1091
    %1093 = vmatmul.bf16.gmra.mxu0 %v1068
    %v1094 = vpop.f32.mrf.mxu0
    %v1095 = vadd.f32 0.0, %v1094
    %v1096 = vpop.f32.mrf.mxu0
    %v1097 = vadd.f32 0.0, %v1096
    %1098 = vdwg.mxu0
    %v1099 = vpack.c.bf16 %v1082, %v1080
    %v1100 = vpack.c.bf16 %v1087, %v1085
    %v1101 = vpack.c.bf16 %v1092, %v1090
    %v1102 = vpack.c.bf16 %v1097, %v1095
    %v1104 = vperm.slane %v111, 0
    %1106 = vmatpush.bf16.msra.mxu0 0
    %1107 = vmatpush.bf16.msra.mxu0 0
    %1108 = vmatpush.bf16.msra.mxu0 0
    %1109 = vmatpush.bf16.msra.mxu0 0
    %1110 = vmatpush.bf16.msra.mxu0 %v1102
    %1111 = vmatpush.bf16.msra.mxu0 %v1101
    %1112 = vmatpush.bf16.msra.mxu0 %v1100
    %1113 = vmatpush.bf16.msra.mxu0 %v1099
    %1114 = vmatmul.bf16.gmra.mxu0 %v304
    %v1115 = vpop.f32.mrf.mxu0
    %v1116 = vadd.f32 %v1104, %v1115
    %v1117 = vpop.f32.mrf.mxu0
    %v1118 = vadd.f32 %v1104, %v1117
    %1119 = vmatmul.bf16.gmra.mxu0 %v307
    %v1120 = vpop.f32.mrf.mxu0
    %v1121 = vadd.f32 %v1104, %v1120
    %v1122 = vpop.f32.mrf.mxu0
    %v1123 = vadd.f32 %v1104, %v1122
    %1124 = vmatmul.bf16.gmra.mxu0 %v310
    %v1125 = vpop.f32.mrf.mxu0
    %v1126 = vadd.f32 %v1104, %v1125
    %v1127 = vpop.f32.mrf.mxu0
    %v1128 = vadd.f32 %v1104, %v1127
    %1129 = vmatmul.bf16.gmra.mxu0 %v313
    %v1130 = vpop.f32.mrf.mxu0
    %v1131 = vadd.f32 %v1104, %v1130
    %v1132 = vpop.f32.mrf.mxu0
    %v1133 = vadd.f32 %v1104, %v1132
    %1134 = vdwg.mxu0
    %1135 = vmax.xlane.f32.xlu0 %v1116
    %v1136 = vpop.xlane.xlu0 %1135
    %1137 = vmax.xlane.f32.xlu0 %v1118
    %v1138 = vpop.xlane.xlu0 %1137
    %1139 = vmax.xlane.f32.xlu0 %v1121
    %v1140 = vpop.xlane.xlu0 %1139
    %1141 = vmax.xlane.f32.xlu0 %v1123
    %v1142 = vpop.xlane.xlu0 %1141
    %1143 = vmax.xlane.f32.xlu0 %v1126
    %v1144 = vpop.xlane.xlu0 %1143
    %1145 = vmax.xlane.f32.xlu0 %v1128
    %v1146 = vpop.xlane.xlu0 %1145
    %1147 = vmax.xlane.f32.xlu0 %v1131
    %v1148 = vpop.xlane.xlu0 %1147
    %1149 = vmax.xlane.f32.xlu0 %v1133
    %v1150 = vpop.xlane.xlu0 %1149
    %v1151 = vsub.f32 %v1116, %v1136
    %v1152 = vsub.f32 %v1118, %v1138
    %v1153 = vsub.f32 %v1121, %v1140
    %v1154 = vsub.f32 %v1123, %v1142
    %v1155 = vsub.f32 %v1126, %v1144
    %v1156 = vsub.f32 %v1128, %v1146
    %v1157 = vsub.f32 %v1131, %v1148
    %v1158 = vsub.f32 %v1133, %v1150
    %v1159 = vmul.f32 %v1151, 1.442695
    %v1160 = vpow.pop %v1159
    %v1161 = vmul.f32 %v1152, 1.442695
    %v1162 = vpow.pop %v1161
    %v1163 = vmul.f32 %v1153, 1.442695
    %v1164 = vpow.pop %v1163
    %v1165 = vmul.f32 %v1154, 1.442695
    %v1166 = vpow.pop %v1165
    %v1167 = vmul.f32 %v1155, 1.442695
    %v1168 = vpow.pop %v1167
    %v1169 = vmul.f32 %v1156, 1.442695
    %v1170 = vpow.pop %v1169
    %v1171 = vmul.f32 %v1157, 1.442695
    %v1172 = vpow.pop %v1171
    %v1173 = vmul.f32 %v1158, 1.442695
    %v1174 = vpow.pop %v1173
    %1175 = vadd.xlane.f32.xlu0 %v1160
    %v1176 = vpop.xlane.xlu0 %1175
    %1177 = vadd.xlane.f32.xlu0 %v1162
    %v1178 = vpop.xlane.xlu0 %1177
    %1179 = vadd.xlane.f32.xlu0 %v1164
    %v1180 = vpop.xlane.xlu0 %1179
    %1181 = vadd.xlane.f32.xlu0 %v1166
    %v1182 = vpop.xlane.xlu0 %1181
    %1183 = vadd.xlane.f32.xlu0 %v1168
    %v1184 = vpop.xlane.xlu0 %1183
    %1185 = vadd.xlane.f32.xlu0 %v1170
    %v1186 = vpop.xlane.xlu0 %1185
    %1187 = vadd.xlane.f32.xlu0 %v1172
    %v1188 = vpop.xlane.xlu0 %1187
    %1189 = vadd.xlane.f32.xlu0 %v1174
    %v1190 = vpop.xlane.xlu0 %1189
    %v1191 = vlog2.pop %v1176
    %v1192 = vmul.f32 %v1191, 0.6931472
    %v1193 = vlog2.pop %v1178
    %v1194 = vmul.f32 %v1193, 0.6931472
    %v1195 = vlog2.pop %v1180
    %v1196 = vmul.f32 %v1195, 0.6931472
    %v1197 = vlog2.pop %v1182
    %v1198 = vmul.f32 %v1197, 0.6931472
    %v1199 = vlog2.pop %v1184
    %v1200 = vmul.f32 %v1199, 0.6931472
    %v1201 = vlog2.pop %v1186
    %v1202 = vmul.f32 %v1201, 0.6931472
    %v1203 = vlog2.pop %v1188
    %v1204 = vmul.f32 %v1203, 0.6931472
    %v1205 = vlog2.pop %v1190
    %v1206 = vmul.f32 %v1205, 0.6931472
    %v1207 = vsub.f32 %v1151, %v1192
    %v1208 = vsub.f32 %v1152, %v1194
    %v1209 = vsub.f32 %v1153, %v1196
    %v1210 = vsub.f32 %v1154, %v1198
    %v1211 = vsub.f32 %v1155, %v1200
    %v1212 = vsub.f32 %v1156, %v1202
    %v1213 = vsub.f32 %v1157, %v1204
    %v1214 = vsub.f32 %v1158, %v1206
    %1215 = vst [vmem:[#allocation8] sm:$0xff] %v1207
    %1216 = vst [vmem:[#allocation8 + $0x8] sm:$0xff] %v1208
    %1217 = vst [vmem:[#allocation8 + $0x10] sm:$0xff] %v1209
    %1218 = vst [vmem:[#allocation8 + $0x18] sm:$0xff] %v1210
    %1219 = vst [vmem:[#allocation8 + $0x20] sm:$0xff] %v1211
    %1220 = vst [vmem:[#allocation8 + $0x28] sm:$0xff] %v1212
    %1221 = vst [vmem:[#allocation8 + $0x30] sm:$0xff] %v1213
    %1222 = vst [vmem:[#allocation8 + $0x38] sm:$0xff] %v1214
    // Predicated region
    $region62: #{tpu_custom_call.1} parent=1 // pred_check
      _
    $region63: #{tpu_custom_call.1} parent=1 // pred_check_branch
      %1224 = sbr.rel (0) target = $region65
    $region64: #{tpu_custom_call.1} parent=1 // pred_region
      %1226 = vsyncadd [#allocation4], 0
      %s1227 = sshll.u32 [#allocation8], 4
      %s1228 = int_to_ptr.vmem [resolvable:$true] %s1227
      %s1229 = sshll.u32 %s12, 4
      %s1230 = int_to_ptr.hbm [resolvable:$true] %s1229
      %1235 = dma.vmem_to_hbm [thread:$0]  %s1228, 1024, %s1230, [#allocation4], 128, 128, 8
    $region65: #{tpu_custom_call.1} parent=1 // pred_fallthru
      _
    // Predicated region
    $region66: #{tpu_custom_call.1} parent=1 // pred_check
      _
    $region67: #{tpu_custom_call.1} parent=1 // pred_check_branch
      %1237 = sbr.rel (0) target = $region69
    $region68: #{tpu_custom_call.1} parent=1 // pred_region
      %1239 = dma.done [#allocation4], 1024
    $region69: #{tpu_custom_call.1} parent=1 // pred_fallthru
      _
    %1240 = vsyncpa [#allocation3], 1
    %1241 = vsyncpa [#allocation6], 1
    %1242 = vsyncpa [#allocation4], 1

</llo_original>
